<compile_context>
chip_gen: v6e
topology: v6e:2x2x1
jax: 0.10.0
libtpu: 0.0.40
codegen_flags: <defaults>
</compile_context>

<pallas_src>
import numpy as np
import jax
import jax.numpy as jnp
from jax.experimental import pallas as pl
from jax.experimental.pallas import tpu as pltpu

# ---- static problem sizes (small, consistent with the forward pass) ----
B      = 2            # batch
C_IN   = 4            # input channels
T      = 16           # temporal length
C_OUT  = 8            # conv output channels
K      = 3            # conv kernel size
PAD    = 1            # 'same' padding (folded into W1 at fold time)
IN_F   = C_IN * T     # 64  -- flattened UNPADDED input features (f32 sublane-aligned)
FEAT   = C_OUT * T    # 128 -- flattened conv features == synaptic matrix dim
H_OUT  = 32           # adult_connectome_net output dim


# ------------------------------------------------------------------ kernel ----
def fused_kernel(x_ref, w1_ref, b1_ref, w2_ref, b2_ref, o_ref):
    # layer 1: Conv1d (padding included) folded into a Toeplitz matmul; output is
    #          already in PyTorch-flat (co*T + t) column order. One MXU push, M=B.
    h = jnp.dot(x_ref[...], w1_ref[...], preferred_element_type=jnp.float32)
    h = jnp.maximum(h + b1_ref[...], 0.0)                      # (M, FEAT)

    # layer 2: (flat @ syn) @ fc_w + fc_b folded into one matmul, then ReLU.
    z = jnp.dot(h, w2_ref[...], preferred_element_type=jnp.float32) + b2_ref[...]
    o_ref[...] = jnp.maximum(z, 0.0)                           # (M, H_OUT)


# ------------------------------------------------- host-side, one-time folds ----
def fold_params(conv_w, conv_b, syn, fc_w, fc_b):
    """Exact, weight-only folds (done once; no dependence on x).

    Zero-padding is folded into W1: the old padded-row mapping is
        W1_nopad[c*T + t_in, :] = W1_pad[c*T_PAD + (t_in + PAD), :]
    i.e. the rows for padded time positions (which multiply zeros) are dropped.
    """
    # shift tensor s[k, t_in, t_out] = 1 iff t_in == t_out + (k - PAD), 0 <= t_in < T
    s = np.zeros((K, T, T), np.float32)
    for k in range(K):
        d = k - PAD
        for t_out in range(T):
            t_in = t_out + d
            if 0 <= t_in < T:
                s[k, t_in, t_out] = 1.0
    s = jnp.asarray(s)

    # W1[c*T + t_in, co*T + t_out] = conv_w[co, c, k] where t_in = t_out + k - PAD
    w1 = jnp.einsum('ock,kit->ciot', conv_w, s).reshape(IN_F, FEAT)
    # b1[0, co*T + t] = conv_b[co]
    b1 = jnp.repeat(conv_b[:, 0], T).reshape(1, FEAT)
    # no nonlinearity between torch.mm(x, syn) and the Linear -> fold exactly
    w2 = jnp.dot(syn, fc_w)                                    # (FEAT, H_OUT)
    b2 = fc_b.reshape(1, H_OUT)
    return w1, b1, w2, b2


# ------------------------------------------------------------------ wrapper ----
@jax.jit
def integrated_model(x, w1, b1, w2, b2):
    # per-call input prep is now just a free C-order bitcast (no jnp.pad):
    # PyTorch .view order == C-order flatten of (C_IN, T) -> feature c*T + t.
    m = x.shape[0]
    x_flat = x.reshape(m, IN_F)

    vmem = pl.BlockSpec(memory_space=pltpu.MemorySpace.VMEM)   # whole array in VMEM
    flops = 2 * m * (IN_F * FEAT + FEAT * H_OUT)
    bytes_accessed = 4 * (m * IN_F + IN_F * FEAT + FEAT
                          + FEAT * H_OUT + H_OUT + m * H_OUT)
    return pl.pallas_call(
        fused_kernel,
        out_shape=jax.ShapeDtypeStruct((m, H_OUT), jnp.float32),
        in_specs=[vmem] * 5,
        out_specs=vmem,
        cost_estimate=pl.CostEstimate(flops=flops,
                                      transcendentals=0,
                                      bytes_accessed=bytes_accessed),
    )(x_flat, w1, b1, w2, b2)


# ---------------------------------------------------------------- reference ----
def reference(x, conv_w, conv_b, syn, fc_w, fc_b):
    # pure-JAX reference of the original (unfolded) forward pass
    xp = jnp.pad(x, ((0, 0), (0, 0), (PAD, PAD)))
    conv = jnp.zeros((x.shape[0], C_OUT, T), jnp.float32)
    for k in range(K):
        conv = conv + jnp.einsum('oc,bct->bot', conv_w[:, :, k], xp[:, :, k:k + T])
    conv = jax.nn.relu(conv + conv_b[None, :, :])
    flat = conv.reshape(x.shape[0], -1)            # f = co*T + t (PyTorch .view order)
    y = flat @ syn
    return jax.nn.relu(y @ fc_w + fc_b)


if __name__ == "__main__":
    key = jax.random.PRNGKey(0)
    k_x, k_cw, k_cb, k_syn_m, k_syn_c, k_fw, k_fb = jax.random.split(key, 7)

    # deterministic synthetic inputs / parameters
    x      = jax.random.normal(k_x,  (B, C_IN, T), jnp.float32)
    conv_w = jax.random.normal(k_cw, (C_OUT, C_IN, K), jnp.float32) * 0.2
    conv_b = jax.random.normal(k_cb, (C_OUT, 1), jnp.float32) * 0.1
    # synaptic matrix: sparse-ish non-negative synapse counts, cast to float32
    syn_mask   = (jax.random.uniform(k_syn_m, (FEAT, FEAT)) < 0.1).astype(jnp.float32)
    syn_counts = jax.random.randint(k_syn_c, (FEAT, FEAT), 1, 5).astype(jnp.float32)
    syn        = syn_mask * syn_counts * 0.05
    fc_w   = jax.random.normal(k_fw, (FEAT, H_OUT), jnp.float32) * 0.05
    fc_b   = jax.random.normal(k_fb, (1, H_OUT), jnp.float32) * 0.1

    # one-time host-side weight folding (exact; padding now baked into W1)
    w1, b1, w2, b2 = fold_params(conv_w, conv_b, syn, fc_w, fc_b)

    out = integrated_model(x, w1, b1, w2, b2)
    out = jax.block_until_ready(out)

    ref = reference(x, conv_w, conv_b, syn, fc_w, fc_b)
    assert out.shape == (B, H_OUT)
    assert jnp.allclose(out, ref, atol=1e-3, rtol=1e-3), "mismatch vs JAX reference"

    print("KERNEL_OK")
</pallas_src>

<mosaic_0001>
module attributes {stable_mosaic.version = 11 : i64} {
  func.func @fused_kernel(%arg0: memref<2x64xf32, #tpu.memory_space<vmem>>, %arg1: memref<64x128xf32, #tpu.memory_space<vmem>>, %arg2: memref<1x128xf32, #tpu.memory_space<vmem>>, %arg3: memref<128x32xf32, #tpu.memory_space<vmem>>, %arg4: memref<1x32xf32, #tpu.memory_space<vmem>>, %arg5: memref<2x32xf32, #tpu.memory_space<vmem>>) attributes {dimension_semantics = [], scalar_prefetch = 0 : i64, scratch_operands = 0 : i64, tpu.core_type = #tpu.core_type<tc>} {
    %c0 = arith.constant 0 : index
    %c0_0 = arith.constant 0 : index
    %0 = vector.load %arg0[%c0, %c0_0] : memref<2x64xf32, #tpu.memory_space<vmem>>, vector<2x64xf32>
    %c0_1 = arith.constant 0 : index
    %c0_2 = arith.constant 0 : index
    %1 = vector.load %arg1[%c0_1, %c0_2] : memref<64x128xf32, #tpu.memory_space<vmem>>, vector<64x128xf32>
    %cst = arith.constant dense<0.000000e+00> : vector<2x128xf32>
    %2 = tpu.matmul %0, %1, %cst {dimension_numbers = #tpu.dot_dimension_numbers<[1], [0], [0], [1], [0, 0, 1, 1], [], []>} : vector<2x64xf32>, vector<64x128xf32>, vector<2x128xf32> -> vector<2x128xf32>
    %c0_3 = arith.constant 0 : index
    %c0_4 = arith.constant 0 : index
    %3 = vector.load %arg2[%c0_3, %c0_4] : memref<1x128xf32, #tpu.memory_space<vmem>>, vector<1x128xf32>
    %4 = vector.broadcast %3 : vector<1x128xf32> to vector<2x128xf32>
    %5 = arith.addf %2, %4 : vector<2x128xf32>
    %cst_5 = arith.constant 0.000000e+00 : f32
    %6 = vector.broadcast %cst_5 : f32 to vector<2x128xf32>
    %7 = arith.maximumf %5, %6 : vector<2x128xf32>
    %c0_6 = arith.constant 0 : index
    %c0_7 = arith.constant 0 : index
    %8 = vector.load %arg3[%c0_6, %c0_7] : memref<128x32xf32, #tpu.memory_space<vmem>>, vector<128x32xf32>
    %cst_8 = arith.constant dense<0.000000e+00> : vector<2x32xf32>
    %9 = tpu.matmul %7, %8, %cst_8 {dimension_numbers = #tpu.dot_dimension_numbers<[1], [0], [0], [1], [0, 0, 1, 1], [], []>} : vector<2x128xf32>, vector<128x32xf32>, vector<2x32xf32> -> vector<2x32xf32>
    %c0_9 = arith.constant 0 : index
    %c0_10 = arith.constant 0 : index
    %10 = vector.load %arg4[%c0_9, %c0_10] : memref<1x32xf32, #tpu.memory_space<vmem>>, vector<1x32xf32>
    %11 = vector.broadcast %10 : vector<1x32xf32> to vector<2x32xf32>
    %12 = arith.addf %9, %11 : vector<2x32xf32>
    %cst_11 = arith.constant 0.000000e+00 : f32
    %13 = vector.broadcast %cst_11 : f32 to vector<2x32xf32>
    %14 = arith.maximumf %12, %13 : vector<2x32xf32>
    %c0_12 = arith.constant 0 : index
    %c0_13 = arith.constant 0 : index
    %15 = vector.load %arg5[%c0_12, %c0_13] : memref<2x32xf32, #tpu.memory_space<vmem>>, vector<2x32xf32>
    tpu.vector_store %arg5[%c0_12, %c0_13], %14 {strides = array<i32>} : memref<2x32xf32, #tpu.memory_space<vmem>>, vector<2x32xf32>,
    return
  }
}

</mosaic_0001>

<llo_original>
// kernel: integrated_model.1
$region0: #{integrated_model.1}
  #allocation0 [shape = 'u32[]', space=smem, size = 0x4, offset = 0x4, fixed_abs, tag = 'smem constant byte address 0x4 - core index']
  #allocation1 [shape = 'u32[144,128]{1,0:T(1,128)}', space=vmem, size = 0x12000, scoped, tag = 'internal scratch']
  %s0 = inlined_call_operand.vmem [shape: f32[2,64], index: 0, kind: input, shape index: {}]
  %s1 = inlined_call_operand.vmem [shape: f32[64,128], index: 1, kind: input, shape index: {}]
  %s2 = inlined_call_operand.vmem [shape: f32[1,128], index: 2, kind: input, shape index: {}]
  %s3 = inlined_call_operand.vmem [shape: f32[128,32], index: 3, kind: input, shape index: {}]
  %s4 = inlined_call_operand.vmem [shape: f32[1,32], index: 4, kind: input, shape index: {}]
  %s5 = inlined_call_operand.hbm [shape: f32[2,32], index: 5, kind: output, shape index: {}]
  %s6 = sld [smem:[#allocation0]]
  $region30: #{integrated_model.1} parent=0
    _
  %s8 = ssub.s32 1, %s6
  %s9 = scalar_select 0, %s8, %s6
  $region1: #{integrated_model.1} parent=0
    #allocation2 [shape = 'u8[1024]{0}', space=vmem, size = 0x400, scoped, tag = 'output window, operand 0, single buffered']
    #allocation3 [shape = 's32[1]{0}', space=sflag, size = 0x4, scoped, tag = 'scoped memory for integrated_model.1']
    %10 = vsyncpa [#allocation3], 0
    // Predicated region
    $region2: #{integrated_model.1} parent=1 // pred_check
      _
    $region3: #{integrated_model.1} parent=1 // pred_check_branch
      %12 = sbr.rel (0) target = $region5
    $region4: #{integrated_model.1} parent=1 // pred_region
      _
    $region5: #{integrated_model.1} parent=1 // pred_fallthru
      _
    // Predicated region
    $region6: #{integrated_model.1} parent=1 // pred_check
      _
    $region7: #{integrated_model.1} parent=1 // pred_check_branch
      %14 = sbr.rel (0) target = $region9
    $region8: #{integrated_model.1} parent=1 // pred_region
      _
    $region9: #{integrated_model.1} parent=1 // pred_fallthru
      _
    // Predicated region
    $region10: #{integrated_model.1} parent=1 // pred_check
      _
    $region11: #{integrated_model.1} parent=1 // pred_check_branch
      %16 = sbr.rel (0) target = $region13
    $region12: #{integrated_model.1} parent=1 // pred_region
      _
    $region13: #{integrated_model.1} parent=1 // pred_fallthru
      _
    // Predicated region
    $region14: #{integrated_model.1} parent=1 // pred_check
      _
    $region15: #{integrated_model.1} parent=1 // pred_check_branch
      %18 = sbr.rel (0) target = $region17
    $region16: #{integrated_model.1} parent=1 // pred_region
      _
    $region17: #{integrated_model.1} parent=1 // pred_fallthru
      _
    // Predicated region
    $region18: #{integrated_model.1} parent=1 // pred_check
      _
    $region19: #{integrated_model.1} parent=1 // pred_check_branch
      %20 = sbr.rel (0) target = $region21
    $region20: #{integrated_model.1} parent=1 // pred_region
      _
    $region21: #{integrated_model.1} parent=1 // pred_fallthru
      _
    %v21 = vld [vmem:[%s0] sm:$0x3]
    %v22 = vld [vmem:[%s1] sm:$0xff]
    %v23 = vld [vmem:[%s1 + $0x8] sm:$0xff]
    %v24 = vld [vmem:[%s1 + $0x10] sm:$0xff]
    %v25 = vld [vmem:[%s1 + $0x18] sm:$0xff]
    %v26 = vld [vmem:[%s1 + $0x20] sm:$0xff]
    %v27 = vld [vmem:[%s1 + $0x28] sm:$0xff]
    %v28 = vld [vmem:[%s1 + $0x30] sm:$0xff]
    %v29 = vld [vmem:[%s1 + $0x38] sm:$0xff]
    %v30 = vld [vmem:[%s2] sm:$0x1]
    %v32 = vlaneseq
    %v33 = vshrl.u32 %v32, 7
    %v34 = vsub.s32 0, %v33
    %v35 = vrot.slane %v30, %v34
    %vm37 = vcmask 523264
    %v39 = vsel %vm37, %v21, 0
    %41 = vmatprep.subr.mxu0 0.0
    %42 = vmatpush1.msra.mxu0 0.0
    %43 = vmatprep.subr.mxu0 0.0
    %44 = vmatpush1.msra.mxu0 0.0
    %45 = vmatprep.subr.mxu0 0.0
    %46 = vmatpush1.msra.mxu0 0.0
    %47 = vmatprep.subr.mxu0 0.0
    %48 = vmatpush1.msra.mxu0 0.0
    %49 = vmatprep.subr.mxu0 0.0
    %50 = vmatpush1.msra.mxu0 0.0
    %51 = vmatprep.subr.mxu0 0.0
    %52 = vmatpush1.msra.mxu0 0.0
    %53 = vmatprep.subr.mxu0 0.0
    %54 = vmatpush1.msra.mxu0 0.0
    %55 = vmatprep.subr.mxu0 0.0
    %56 = vmatpush1.msra.mxu0 0.0
    %57 = vmatprep.subr.mxu0 0.0
    %58 = vmatpush1.msra.mxu0 %v29
    %59 = vmatprep.subr.mxu0 0.0
    %60 = vmatpush1.msra.mxu0 %v28
    %61 = vmatprep.subr.mxu0 0.0
    %62 = vmatpush1.msra.mxu0 %v27
    %63 = vmatprep.subr.mxu0 0.0
    %64 = vmatpush1.msra.mxu0 %v26
    %65 = vmatprep.subr.mxu0 0.0
    %66 = vmatpush1.msra.mxu0 %v25
    %67 = vmatprep.subr.mxu0 0.0
    %68 = vmatpush1.msra.mxu0 %v24
    %69 = vmatprep.subr.mxu0 0.0
    %70 = vmatpush1.msra.mxu0 %v23
    %71 = vmatprep.subr.mxu0 0.0
    %72 = vmatpush1.msra.mxu0 %v22
    %73 = vmatprep.subr.mxu0 0.0
    %74 = vmatpush2.msra.mxu0 0.0
    %75 = vmatprep.subr.mxu0 0.0
    %76 = vmatpush2.msra.mxu0 0.0
    %77 = vmatprep.subr.mxu0 0.0
    %78 = vmatpush2.msra.mxu0 0.0
    %79 = vmatprep.subr.mxu0 0.0
    %80 = vmatpush2.msra.mxu0 0.0
    %81 = vmatprep.subr.mxu0 0.0
    %82 = vmatpush2.msra.mxu0 0.0
    %83 = vmatprep.subr.mxu0 0.0
    %84 = vmatpush2.msra.mxu0 0.0
    %85 = vmatprep.subr.mxu0 0.0
    %86 = vmatpush2.msra.mxu0 0.0
    %87 = vmatprep.subr.mxu0 0.0
    %88 = vmatpush2.msra.mxu0 0.0
    %89 = vmatprep.subr.mxu0 0.0
    %90 = vmatpush2.msra.mxu0 0.0
    %91 = vmatprep.subr.mxu0 0.0
    %92 = vmatpush2.msra.mxu0 0.0
    %93 = vmatprep.subr.mxu0 0.0
    %94 = vmatpush2.msra.mxu0 0.0
    %95 = vmatprep.subr.mxu0 0.0
    %96 = vmatpush2.msra.mxu0 0.0
    %97 = vmatprep.subr.mxu0 0.0
    %98 = vmatpush2.msra.mxu0 0.0
    %99 = vmatprep.subr.mxu0 0.0
    %100 = vmatpush2.msra.mxu0 0.0
    %101 = vmatprep.subr.mxu0 0.0
    %102 = vmatpush2.msra.mxu0 0.0
    %103 = vmatprep.subr.mxu0 0.0
    %104 = vmatpush2.msra.mxu0 0.0
    %105 = vmatprep.mubr.f32.mxu0 0.0
    %106 = vmatmul.mubr.f32.gmra.mxu0 %v39
    %v107 = vpop.f32.mrf.mxu0
    %v108 = vadd.f32 %v35, %v107
    %v109 = vpop.f32.mrf.mxu0
    %110 = vdwg.mxu0
    %v111 = vmax.f32 %v108, 0.0
    %v112 = vld [vmem:[%s3] sm:$0xff]
    %v113 = vld [vmem:[%s3 + $0x8] sm:$0xff]
    %v114 = vld [vmem:[%s3 + $0x10] sm:$0xff]
    %v115 = vld [vmem:[%s3 + $0x18] sm:$0xff]
    %v116 = vld [vmem:[%s3 + $0x20] sm:$0xff]
    %v117 = vld [vmem:[%s3 + $0x28] sm:$0xff]
    %v118 = vld [vmem:[%s3 + $0x30] sm:$0xff]
    %v119 = vld [vmem:[%s3 + $0x38] sm:$0xff]
    %v120 = vld [vmem:[%s3 + $0x40] sm:$0xff]
    %v121 = vld [vmem:[%s3 + $0x48] sm:$0xff]
    %v122 = vld [vmem:[%s3 + $0x50] sm:$0xff]
    %v123 = vld [vmem:[%s3 + $0x58] sm:$0xff]
    %v124 = vld [vmem:[%s3 + $0x60] sm:$0xff]
    %v125 = vld [vmem:[%s3 + $0x68] sm:$0xff]
    %v126 = vld [vmem:[%s3 + $0x70] sm:$0xff]
    %v127 = vld [vmem:[%s3 + $0x78] sm:$0xff]
    %v128 = vld [vmem:[%s4] sm:$0x1]
    %v130 = vlaneseq
    %v131 = vshrl.u32 %v130, 7
    %v132 = vsub.s32 0, %v131
    %v133 = vrot.slane %v128, %v132
    %135 = vmatprep.subr.mxu0 0.0
    %136 = vmatpush1.msra.mxu0 %v127
    %137 = vmatprep.subr.mxu0 0.0
    %138 = vmatpush1.msra.mxu0 %v126
    %139 = vmatprep.subr.mxu0 0.0
    %140 = vmatpush1.msra.mxu0 %v125
    %141 = vmatprep.subr.mxu0 0.0
    %142 = vmatpush1.msra.mxu0 %v124
    %143 = vmatprep.subr.mxu0 0.0
    %144 = vmatpush1.msra.mxu0 %v123
    %145 = vmatprep.subr.mxu0 0.0
    %146 = vmatpush1.msra.mxu0 %v122
    %147 = vmatprep.subr.mxu0 0.0
    %148 = vmatpush1.msra.mxu0 %v121
    %149 = vmatprep.subr.mxu0 0.0
    %150 = vmatpush1.msra.mxu0 %v120
    %151 = vmatprep.subr.mxu0 0.0
    %152 = vmatpush1.msra.mxu0 %v119
    %153 = vmatprep.subr.mxu0 0.0
    %154 = vmatpush1.msra.mxu0 %v118
    %155 = vmatprep.subr.mxu0 0.0
    %156 = vmatpush1.msra.mxu0 %v117
    %157 = vmatprep.subr.mxu0 0.0
    %158 = vmatpush1.msra.mxu0 %v116
    %159 = vmatprep.subr.mxu0 0.0
    %160 = vmatpush1.msra.mxu0 %v115
    %161 = vmatprep.subr.mxu0 0.0
    %162 = vmatpush1.msra.mxu0 %v114
    %163 = vmatprep.subr.mxu0 0.0
    %164 = vmatpush1.msra.mxu0 %v113
    %165 = vmatprep.subr.mxu0 0.0
    %166 = vmatpush1.msra.mxu0 %v112
    %167 = vmatprep.subr.mxu0 0.0
    %168 = vmatpush2.msra.mxu0 0.0
    %169 = vmatprep.subr.mxu0 0.0
    %170 = vmatpush2.msra.mxu0 0.0
    %171 = vmatprep.subr.mxu0 0.0
    %172 = vmatpush2.msra.mxu0 0.0
    %173 = vmatprep.subr.mxu0 0.0
    %174 = vmatpush2.msra.mxu0 0.0
    %175 = vmatprep.subr.mxu0 0.0
    %176 = vmatpush2.msra.mxu0 0.0
    %177 = vmatprep.subr.mxu0 0.0
    %178 = vmatpush2.msra.mxu0 0.0
    %179 = vmatprep.subr.mxu0 0.0
    %180 = vmatpush2.msra.mxu0 0.0
    %181 = vmatprep.subr.mxu0 0.0
    %182 = vmatpush2.msra.mxu0 0.0
    %183 = vmatprep.subr.mxu0 0.0
    %184 = vmatpush2.msra.mxu0 0.0
    %185 = vmatprep.subr.mxu0 0.0
    %186 = vmatpush2.msra.mxu0 0.0
    %187 = vmatprep.subr.mxu0 0.0
    %188 = vmatpush2.msra.mxu0 0.0
    %189 = vmatprep.subr.mxu0 0.0
    %190 = vmatpush2.msra.mxu0 0.0
    %191 = vmatprep.subr.mxu0 0.0
    %192 = vmatpush2.msra.mxu0 0.0
    %193 = vmatprep.subr.mxu0 0.0
    %194 = vmatpush2.msra.mxu0 0.0
    %195 = vmatprep.subr.mxu0 0.0
    %196 = vmatpush2.msra.mxu0 0.0
    %197 = vmatprep.subr.mxu0 0.0
    %198 = vmatpush2.msra.mxu0 0.0
    %199 = vmatprep.mubr.f32.mxu0 0.0
    %200 = vmatmul.mubr.f32.gmra.mxu0 %v111
    %v201 = vpop.f32.mrf.mxu0
    %v202 = vadd.f32 %v133, %v201
    %v203 = vpop.f32.mrf.mxu0
    %204 = vdwg.mxu0
    %v205 = vmax.f32 %v202, 0.0
    %vm206 = vcmask 254976
    %207 = vst.msk [vmem:[#allocation2] sm:$0x3] %vm206, %v205
    // Predicated region
    $region22: #{integrated_model.1} parent=1 // pred_check
      _
    $region23: #{integrated_model.1} parent=1 // pred_check_branch
      %209 = sbr.rel (0) target = $region25
    $region24: #{integrated_model.1} parent=1 // pred_region
      %s211 = ssub.s32 32, 32
      %212 = vsyncadd [#allocation3], %s211
      %s214 = sshll.u32 [#allocation2], 4
      %s215 = int_to_ptr.vmem [resolvable:$true] %s214
      %217 = dma.vmem_to_hbm [thread:$0]  %s215, 32, %s5, [#allocation3]
    $region25: #{integrated_model.1} parent=1 // pred_fallthru
      _
    // Predicated region
    $region26: #{integrated_model.1} parent=1 // pred_check
      _
    $region27: #{integrated_model.1} parent=1 // pred_check_branch
      %219 = sbr.rel (0) target = $region29
    $region28: #{integrated_model.1} parent=1 // pred_region
      %220 = dma.done [#allocation3], 32
    $region29: #{integrated_model.1} parent=1 // pred_fallthru
      _
    %221 = vsyncpa [#allocation3], 1

</llo_original>
